<compile_context>
chip_gen: v7x
topology: tpu7x:2x2x1
jax: 0.10.0
libtpu: 0.0.40
codegen_flags: <defaults>
</compile_context>

<pallas_src>
import functools

import jax
import jax.numpy as jnp
import numpy as np
from jax.experimental import pallas as pl
from jax.experimental.pallas import tpu as pltpu


def _gap_kernel_single(x_ref, o_ref, *, inv_hw):
    # x_ref: (m_blk, K)   rows = (n, c) pairs, lanes = full flattened H*W
    # o_ref: (m_blk, 1)   per-row mean
    s = jnp.sum(x_ref[...].astype(jnp.float32), axis=1, keepdims=True)
    o_ref[...] = (s * inv_hw).astype(o_ref.dtype)


def _gap_kernel_multi(x_ref, o_ref, acc_ref, *, inv_hw):
    # x_ref:   (m_blk, k_blk)  reduction chunk
    # o_ref:   (m_blk, 1)      per-row mean (written once, on the last k step)
    # acc_ref: (m_blk, 1)      f32 running sum across the reduction grid axis
    k = pl.program_id(1)

    @pl.when(k == 0)
    def _():
        acc_ref[...] = jnp.zeros_like(acc_ref)

    acc_ref[...] += jnp.sum(x_ref[...].astype(jnp.float32), axis=1,
                            keepdims=True)

    @pl.when(k == pl.num_programs(1) - 1)
    def _():
        o_ref[...] = (acc_ref[...] * inv_hw).astype(o_ref.dtype)


def _largest_aligned_divisor(dim, align, max_blk):
    """Largest block <= max_blk that divides `dim` and is a multiple of
    `align`; falls back to the full dim (always legal for a BlockSpec)."""
    if dim % align != 0 or dim <= align:
        return dim
    cap = min(dim, max_blk)
    blk = cap - (cap % align)
    blk = max(blk, align)
    while dim % blk != 0:
        blk -= align
    return blk


def global_avg_pool2d(x_nchw, *, block_bytes=4 * 1024 * 1024):
    """Pallas implementation of nn.functional.avg_pool2d(x, x.size()[2:]).

    x_nchw: (N, C, H, W)  ->  (N, C, 1, 1)
    """
    N, C, H, W = x_nchw.shape
    M, K = N * C, H * W

    # Free, layout-preserving reshape: rows = (n, c), lanes = flattened H*W.
    x2d = x_nchw.reshape(M, K)
    itemsize = jnp.dtype(x2d.dtype).itemsize

    # Reduction chunk: lane-aligned, as wide as possible so every load is a
    # full-width lane-dense vreg read.
    k_blk = _largest_aligned_divisor(K, 128, 2048)
    # Row block: sublane-aligned, sized so one input block stays comfortably
    # inside the default scoped-VMEM budget even with double buffering.
    max_rows = max(8, block_bytes // max(1, k_blk * itemsize))
    m_blk = _largest_aligned_divisor(M, 8, max_rows)

    n_row_blocks = M // m_blk
    n_red_blocks = K // k_blk
    inv_hw = 1.0 / float(K)

    if n_red_blocks == 1:
        # Whole reduction axis in one block: no scratch, no init/finalize.
        out2d = pl.pallas_call(
            functools.partial(_gap_kernel_single, inv_hw=inv_hw),
            out_shape=jax.ShapeDtypeStruct((M, 1), x_nchw.dtype),
            grid_spec=pltpu.PrefetchScalarGridSpec(
                num_scalar_prefetch=0,
                grid=(n_row_blocks,),
                in_specs=[pl.BlockSpec((m_blk, K), lambda i: (i, 0))],
                out_specs=pl.BlockSpec((m_blk, 1), lambda i: (i, 0)),
            ),
            compiler_params=pltpu.CompilerParams(
                dimension_semantics=("parallel",)),
        )(x2d)
    else:
        out2d = pl.pallas_call(
            functools.partial(_gap_kernel_multi, inv_hw=inv_hw),
            out_shape=jax.ShapeDtypeStruct((M, 1), x_nchw.dtype),
            grid_spec=pltpu.PrefetchScalarGridSpec(
                num_scalar_prefetch=0,
                grid=(n_row_blocks, n_red_blocks),
                in_specs=[pl.BlockSpec((m_blk, k_blk), lambda i, k: (i, k))],
                out_specs=pl.BlockSpec((m_blk, 1), lambda i, k: (i, 0)),
                scratch_shapes=[pltpu.VMEM((m_blk, 1), jnp.float32)],
            ),
            compiler_params=pltpu.CompilerParams(
                dimension_semantics=("parallel", "arbitrary")),
        )(x2d)

    return out2d.reshape(N, C, 1, 1)


def global_avg_pool2d_reference(x_nchw):
    """Pure-JAX reference matching torch.nn.functional.avg_pool2d."""
    return jnp.mean(x_nchw, axis=(2, 3), keepdims=True)


if __name__ == "__main__":
    N, C, H, W = 2, 4, 16, 16
    key = jax.random.PRNGKey(0)
    x = jax.random.normal(key, (N, C, H, W), jnp.float32)

    out = jax.block_until_ready(global_avg_pool2d(x))
    ref = jax.block_until_ready(global_avg_pool2d_reference(x))

    assert out.shape == (N, C, 1, 1), out.shape
    np.testing.assert_allclose(np.asarray(out), np.asarray(ref),
                               rtol=1e-6, atol=1e-6)
    print("KERNEL_OK")
</pallas_src>

<mosaic_0001>
module attributes {stable_mosaic.version = 11 : i64} {
  func.func @_gap_kernel_single(%arg0: i32, %arg1: memref<8x256xf32, #tpu.memory_space<vmem>>, %arg2: memref<8x1xf32, #tpu.memory_space<vmem>>) attributes {dimension_semantics = [#tpu.dimension_semantics<parallel>], iteration_bounds = array<i64: 1>, scalar_prefetch = 0 : i64, scratch_operands = 0 : i64, tpu.core_type = #tpu.core_type<tc>, window_params = [{transform_indices = @transform_0, window_bounds = array<i64: 8, 256>}, {transform_indices = @transform_1, window_bounds = array<i64: 8, 1>}]} {
    %c0 = arith.constant 0 : index
    %c0_0 = arith.constant 0 : index
    %0 = vector.load %arg1[%c0, %c0_0] : memref<8x256xf32, #tpu.memory_space<vmem>>, vector<8x256xf32>
    %cst = arith.constant dense<0.000000e+00> : vector<8xf32>
    %1 = vector.multi_reduction <add>, %0, %cst [1] : vector<8x256xf32> to vector<8xf32>
    %2 = vector.shape_cast %1 : vector<8xf32> to vector<8x1xf32>
    %cst_1 = arith.constant 3.906250e-03 : f32
    %3 = vector.broadcast %cst_1 : f32 to vector<8x1xf32>
    %4 = arith.mulf %2, %3 : vector<8x1xf32>
    %c0_2 = arith.constant 0 : index
    %c0_3 = arith.constant 0 : index
    %5 = vector.load %arg2[%c0_2, %c0_3] : memref<8x1xf32, #tpu.memory_space<vmem>>, vector<8x1xf32>
    tpu.vector_store %arg2[%c0_2, %c0_3], %4 {strides = array<i32>} : memref<8x1xf32, #tpu.memory_space<vmem>>, vector<8x1xf32>,
    return
  }
  func.func @transform_0(%arg0: i32) -> (i32, i32) {
    %c0_i32 = arith.constant 0 : i32
    %c0_i32_0 = arith.constant 0 : i32
    return %arg0, %c0_i32 : i32, i32
  }
  func.func @transform_1(%arg0: i32) -> (i32, i32) {
    %c0_i32 = arith.constant 0 : i32
    %c0_i32_0 = arith.constant 0 : i32
    return %arg0, %c0_i32 : i32, i32
  }
}

</mosaic_0001>

<llo_original>
// kernel: tpu_custom_call.1
$region0: #{tpu_custom_call.1}
  #allocation0 [shape = 'u32[]', space=smem, size = 0x4, offset = 0x4, fixed_abs, tag = 'smem constant byte address 0x4 - core index']
  #allocation1 [shape = 'u32[144,128]{1,0:T(1,128)}', space=vmem, size = 0x12000, scoped, tag = 'internal scratch']
  %s0 = inlined_call_operand.hbm [shape: f32[8,256], index: 0, kind: input, shape index: {}]
  %s1 = inlined_call_operand.vmem [shape: f32[8,1], index: 1, kind: output, shape index: {}]
  %s2 = sld [smem:[#allocation0]]
  $region18: #{tpu_custom_call.1} parent=0
    _
  %s4 = ssub.s32 1, %s2
  %s5 = scalar_select 0, %s4, %s2
  $region1: #{tpu_custom_call.1} parent=0
    #allocation2 [shape = 'u8[8192]{0}', space=vmem, size = 0x2000, scoped, tag = 'input window, operand 0, single buffered']
    #allocation3 [shape = 's32[1]{0}', space=sflag, size = 0x4, scoped, tag = 'scoped memory for tpu_custom_call.1']
    %6 = vsyncpa [#allocation3], 0
    // Predicated region
    $region2: #{tpu_custom_call.1} parent=1 // pred_check
      _
    $region3: #{tpu_custom_call.1} parent=1 // pred_check_branch
      %8 = sbr.rel (0) target = $region5
    $region4: #{tpu_custom_call.1} parent=1 // pred_region
      %s10 = ssub.s32 256, 256
      %11 = vsyncadd [#allocation3], %s10
      %s13 = sshll.u32 [#allocation2], 4
      %s14 = int_to_ptr.vmem [resolvable:$true] %s13
      %16 = dma.hbm_to_vmem [thread:$0]  %s0, 256, %s14, [#allocation3]
    $region5: #{tpu_custom_call.1} parent=1 // pred_fallthru
      _
    // Predicated region
    $region6: #{tpu_custom_call.1} parent=1 // pred_check
      _
    $region7: #{tpu_custom_call.1} parent=1 // pred_check_branch
      %18 = sbr.rel (0) target = $region9
    $region8: #{tpu_custom_call.1} parent=1 // pred_region
      %19 = dma.done [#allocation3], 256
    $region9: #{tpu_custom_call.1} parent=1 // pred_fallthru
      _
    %v20 = vld [vmem:[#allocation2] sm:$0xff]
    %v21 = vld [vmem:[#allocation2 + $0x8] sm:$0xff]
    %v22 = vadd.f32 %v20, %v21
    %23 = vadd.xlane.f32.xlu0 %v22
    %v24 = vpop.xlane.xlu0 %23
    %v25 = vmul.f32 %v24, 0.00390625
    %vm26 = vcmask 7168
    %27 = vst.msk [vmem:[%s1] sm:$0xff] %vm26, %v25
    // Predicated region
    $region10: #{tpu_custom_call.1} parent=1 // pred_check
      _
    $region11: #{tpu_custom_call.1} parent=1 // pred_check_branch
      %29 = sbr.rel (0) target = $region13
    $region12: #{tpu_custom_call.1} parent=1 // pred_region
      _
    $region13: #{tpu_custom_call.1} parent=1 // pred_fallthru
      _
    // Predicated region
    $region14: #{tpu_custom_call.1} parent=1 // pred_check
      _
    $region15: #{tpu_custom_call.1} parent=1 // pred_check_branch
      %31 = sbr.rel (0) target = $region17
    $region16: #{tpu_custom_call.1} parent=1 // pred_region
      _
    $region17: #{tpu_custom_call.1} parent=1 // pred_fallthru
      _
    %32 = vsyncpa [#allocation3], 1

</llo_original>
